<compile_context>
chip_gen: v7x
topology: tpu7x:2x2x1
jax: 0.10.0
libtpu: 0.0.40
codegen_flags: <defaults>
</compile_context>

<pallas_src>
import numpy as np
import jax
import jax.numpy as jnp
from jax.experimental import pallas as pl
from jax.experimental.pallas import tpu as pltpu


def _round_up(x: int, m: int) -> int:
    return ((x + m - 1) // m) * m


# --------------------------------------------------------------------------
# Host-side (module __init__) edge construction: dedup undirected edges.
# TODO(synk): the set-based edge pruning is inherently host-side Python
# (matches the PyTorch __init__); it is not part of the forward hot path.
# --------------------------------------------------------------------------
def build_edges(faces: np.ndarray) -> np.ndarray:
    """faces: (B, F, 3) int -> (B, E, 2) deduplicated undirected edges."""
    per_batch = []
    for b in range(faces.shape[0]):
        f = faces[b]
        e = np.concatenate([f[:, [0, 1]], f[:, [1, 2]], f[:, [2, 0]]], axis=0)
        es = {(int(u), int(v)) if u < v else (int(v), int(u)) for u, v in e}
        es = np.array(sorted(es), dtype=np.int32)
        per_batch.append(es)
    E = per_batch[0].shape[0]
    assert all(p.shape[0] == E for p in per_batch), "edge count must match per batch"
    return np.stack(per_batch, axis=0)  # (B, E, 2)


# --------------------------------------------------------------------------
# Host-side topology precompute (static module state, numpy): sort edges by
# min endpoint, compute per-(b, edge-tile) vertex-tile bounds, pad indices.
# --------------------------------------------------------------------------
def _precompute_edge_layout(edges_np: np.ndarray, V: int, v_t: int, e_t: int):
    B, E, _ = edges_np.shape
    v_pad = _round_up(V, v_t)
    n_vt_total = v_pad // v_t
    e_pad = _round_up(E, e_t)
    n_et = e_pad // e_t

    i0 = edges_np[:, :, 0].astype(np.int64)
    i1 = edges_np[:, :, 1].astype(np.int64)
    assert i0.min() >= 0 and i1.min() >= 0 and i0.max() < V and i1.max() < V, \
        "edge indices out of range"

    # Sort edges per batch by min endpoint (mean is order-invariant) so each
    # edge tile touches a narrow, contiguous range of vertex tiles.
    order = np.argsort(np.minimum(i0, i1), axis=1, kind="stable")
    i0 = np.take_along_axis(i0, order, axis=1)
    i1 = np.take_along_axis(i1, order, axis=1)

    # Per-(b, edge-tile) first/last touched vertex tile, computed over REAL
    # edges only (pad slots repeat the last real edge's bounds -> no widening).
    lo = np.minimum(i0, i1)
    hi = np.maximum(i0, i1)
    lo_p = np.concatenate([lo, np.repeat(lo[:, -1:], e_pad - E, axis=1)], axis=1)
    hi_p = np.concatenate([hi, np.repeat(hi[:, -1:], e_pad - E, axis=1)], axis=1)
    t_lo = (lo_p.reshape(B, n_et, e_t).min(axis=2) // v_t).astype(np.int32)
    t_hi = (hi_p.reshape(B, n_et, e_t).max(axis=2) // v_t).astype(np.int32)
    max_span = int((t_hi - t_lo + 1).max())
    # Clamp so vstart + max_span never runs past the padded vertex range while
    # [t_lo, t_hi] is always covered.
    vstart = np.minimum(t_lo, n_vt_total - max_span).astype(np.int32)  # (B, n_et)

    # Degenerate (i0 == i1) and padded edge slots are mapped to an
    # out-of-range sentinel (v_pad): the sentinel's tile-local index is always
    # >= v_t, so it never matches any iota row in any visited tile and the
    # contribution is exactly 0.  (Degenerate real edges are still counted in
    # the B*E divisor, matching the reference which yields ||v - v||^2 = 0.)
    sentinel = np.int64(v_pad)
    degen = i0 == i1
    i0 = np.where(degen, sentinel, i0)
    i1 = np.where(degen, sentinel, i1)
    pad = np.full((B, e_pad - E), sentinel, dtype=np.int64)
    i0 = np.concatenate([i0, pad], axis=1).astype(np.int32)[:, None, :]  # (B,1,E_pad)
    i1 = np.concatenate([i1, pad], axis=1).astype(np.int32)[:, None, :]

    return i0, i1, vstart.reshape(-1), max_span, n_et, e_pad, n_vt_total, v_pad


# --------------------------------------------------------------------------
# Wrapper + Pallas kernel
# --------------------------------------------------------------------------
def edge_loss_simple(vertices: jnp.ndarray, edges, *,
                     max_v_tile: int = 1024, max_e_tile: int = 1024) -> jnp.ndarray:
    """vertices: (B, V, 3) f32, edges: (B, E, 2) int (static topology) -> scalar."""
    B, V, C = vertices.shape
    assert C == 3
    edges_np = np.asarray(edges)          # static topology (module __init__ state)
    E = edges_np.shape[1]

    # Lane-aligned tile sizes.  Per-step working set: sel slab v_t*e_t*4 B
    # (<= 4 MiB at 1024x1024) + small blocks/scratch -> far below the explicit
    # 32 MiB scoped VMEM budget on v5e/v6e (128 MiB) and v7x (64 MiB).
    v_t = min(max_v_tile, _round_up(V, 128))
    e_t = min(max_e_tile, _round_up(E, 128))

    (i0_np, i1_np, vstart_np, max_span, n_et, e_pad,
     n_vt_total, v_pad) = _precompute_edge_layout(edges_np, V, v_t, e_t)

    # Lane-dense layout plumbing (layout only): verts -> (B, 3, V_pad), V on
    # the 128-lane axis; padded vertex lanes are zero and never selected.
    verts_t = jnp.swapaxes(vertices.astype(jnp.float32), 1, 2)   # (B, 3, V)
    verts_t = jnp.pad(verts_t, ((0, 0), (0, 0), (0, v_pad - V)))

    def kernel(vstart_ref, i0_ref, i1_ref, v_ref, out_ref, d_acc):
        b = pl.program_id(0)
        et = pl.program_id(1)
        vt = pl.program_id(2)
        n_vt = pl.num_programs(2)

        # Per-(b, edge-tile) init of the (v0 - v1) accumulator.
        @pl.when(vt == 0)
        def _():
            d_acc[...] = jnp.zeros_like(d_acc)

        verts = v_ref[0]                                   # (3, v_t) f32
        # Tile-local edge indices: subtract the base from the (1, e_t) rows
        # instead of adding it to the (v_t, e_t) iota (much cheaper on VALU).
        base = (vstart_ref[b * n_et + et] + vt) * v_t
        i0 = i0_ref[0] - base                              # (1, e_t) int32
        i1 = i1_ref[0] - base

        # Edge-incidence tile: +1 at row i0, -1 at row i1, else 0 (single
        # fused nested select).  Sentinel indices never match -> all-zero col.
        row = jax.lax.broadcasted_iota(jnp.int32, (v_t, e_t), 0)
        one = jnp.float32(1.0)
        neg = jnp.float32(-1.0)
        zero = jnp.float32(0.0)
        sel = jnp.where(row == i0, one, jnp.where(row == i1, neg, zero))

        # verts(3, v_t) @ sel(v_t, e_t) accumulates (v0 - v1) over the visited
        # vertex tiles, E lane-dense in the result.  precision=HIGHEST pins
        # exact-f32 MXU behavior (review #8); MXU has large slack here.
        d_acc[...] += jnp.dot(verts, sel,
                              preferred_element_type=jnp.float32,
                              precision=jax.lax.Precision.HIGHEST)

        # Edge-tile epilogue: square, cross-sublane reduce, lane-dense store.
        @pl.when(vt == n_vt - 1)
        def _():
            d = d_acc[...]
            out_ref[0, 0] = jnp.sum(d * d, axis=0, keepdims=True)

    partials = pl.pallas_call(
        kernel,
        out_shape=jax.ShapeDtypeStruct((B, n_et, 1, e_t), jnp.float32),
        grid_spec=pltpu.PrefetchScalarGridSpec(
            num_scalar_prefetch=1,                 # vstart (B*n_et,) int32 -> SMEM
            grid=(B, n_et, max_span),
            in_specs=[
                # Index blocks independent of the inner V axis -> resident
                # across the whole (shrunken) V reduction, no re-DMA.
                pl.BlockSpec((1, 1, e_t), lambda b, et, vt, vs: (b, 0, et)),
                pl.BlockSpec((1, 1, e_t), lambda b, et, vt, vs: (b, 0, et)),
                # Data-dependent vertex tile: only tiles inside this edge
                # tile's [vmin, vmax] span are ever fetched/visited.
                pl.BlockSpec((1, 3, v_t),
                             lambda b, et, vt, vs: (b, 0, vs[b * n_et + et] + vt)),
            ],
            out_specs=pl.BlockSpec((1, 1, 1, e_t),
                                   lambda b, et, vt, vs: (b, et, 0, 0)),
            scratch_shapes=[
                pltpu.VMEM((3, e_t), jnp.float32),   # d_acc: v0 - v1 over V tiles
            ],
        ),
        compiler_params=pltpu.CompilerParams(
            # Batch AND edge-tile axes parallel: per-(b, et) partial outputs
            # let v7x's two TensorCores split work even when B == 1.
            dimension_semantics=("parallel", "parallel", "arbitrary"),
            vmem_limit_bytes=32 * 1024 * 1024,
        ),
    )(jnp.asarray(vstart_np), jnp.asarray(i0_np), jnp.asarray(i1_np), verts_t)

    # Tiny final reduction of the lane-dense partials + mean over the B*E real
    # edges (sentinel/padded slots contribute exactly 0 and pads are not
    # counted in the divisor).
    return jnp.sum(partials) / (B * E)


# --------------------------------------------------------------------------
# Pure-JAX reference
# --------------------------------------------------------------------------
def edge_loss_reference(vertices: jnp.ndarray, edges: jnp.ndarray) -> jnp.ndarray:
    def one(vb, eb):
        v0 = vb[eb[:, 0]]
        v1 = vb[eb[:, 1]]
        return jnp.sum((v0 - v1) ** 2, axis=-1)  # squared edge length

    el2 = jax.vmap(one)(vertices, edges)  # (B, E)
    return el2.mean()


if __name__ == "__main__":
    key = jax.random.PRNGKey(0)

    def run_case(B, V, key):
        strip = np.array([[i, i + 1, i + 2] for i in range(V - 2)], dtype=np.int32)
        faces = np.stack([strip for _ in range(B)], axis=0)     # (B, V-2, 3)
        edges = build_edges(faces)                              # (B, 2V-3, 2)
        vertices = jax.random.normal(key, (B, V, 3), dtype=jnp.float32)
        loss = jax.block_until_ready(edge_loss_simple(vertices, edges))
        ref = jax.block_until_ready(edge_loss_reference(vertices, jnp.asarray(edges)))
        assert np.allclose(np.asarray(loss), np.asarray(ref), rtol=2e-5, atol=1e-6), (
            f"mismatch (B={B}, V={V}): pallas={float(loss)} ref={float(ref)}"
        )

    k1, k2 = jax.random.split(key)
    # Small case (single tile everywhere).
    run_case(B=2, V=16, key=k1)
    # Multi-tile case: exercises edge-tile partial outputs, sentinel padding,
    # the data-dependent vertex-tile index map and multi-tile accumulation.
    run_case(B=2, V=1500, key=k2)

    print("KERNEL_OK")
</pallas_src>

<mosaic_0001>
module attributes {stable_mosaic.version = 11 : i64} {
  func.func @kernel(%arg0: i32, %arg1: i32, %arg2: i32, %arg3: memref<2xi32, #tpu.memory_space<smem>>, %arg4: memref<1x1x128xi32, #tpu.memory_space<vmem>>, %arg5: memref<1x1x128xi32, #tpu.memory_space<vmem>>, %arg6: memref<1x3x128xf32, #tpu.memory_space<vmem>>, %arg7: memref<1x1x1x128xf32, #tpu.memory_space<vmem>>, %arg8: memref<3x128xf32, #tpu.memory_space<vmem>>) attributes {dimension_semantics = [#tpu.dimension_semantics<parallel>, #tpu.dimension_semantics<parallel>, #tpu.dimension_semantics<arbitrary>], iteration_bounds = array<i64: 2, 1, 1>, scalar_prefetch = 1 : i64, scratch_operands = 1 : i64, tpu.core_type = #tpu.core_type<tc>, window_params = [{transform_indices = @transform_0, window_bounds = array<i64: 1, 1, 128>}, {transform_indices = @transform_1, window_bounds = array<i64: 1, 1, 128>}, {transform_indices = @transform_2, window_bounds = array<i64: 1, 3, 128>}, {transform_indices = @transform_3, window_bounds = array<i64: 1, 1, 1, 128>}]} {
    %c0_i32 = arith.constant 0 : i32
    %0 = arith.cmpi eq, %arg2, %c0_i32 : i32
    %1 = arith.extui %0 : i1 to i32
    %c0_i32_0 = arith.constant 0 : i32
    %2 = arith.cmpi ne, %1, %c0_i32_0 : i32
    scf.if %2 {
      %cst_18 = arith.constant 0.000000e+00 : f32
      %36 = vector.broadcast %cst_18 : f32 to vector<3x128xf32>
      %c0_19 = arith.constant 0 : index
      %c0_20 = arith.constant 0 : index
      %37 = vector.load %arg8[%c0_19, %c0_20] : memref<3x128xf32, #tpu.memory_space<vmem>>, vector<3x128xf32>
      tpu.vector_store %arg8[%c0_19, %c0_20], %36 {strides = array<i32>} : memref<3x128xf32, #tpu.memory_space<vmem>>, vector<3x128xf32>,
    } else {
    }
    %c0 = arith.constant 0 : index
    %c0_1 = arith.constant 0 : index
    %c0_2 = arith.constant 0 : index
    %3 = vector.load %arg6[%c0, %c0_1, %c0_2] : memref<1x3x128xf32, #tpu.memory_space<vmem>>, vector<1x3x128xf32>
    %4 = vector.shape_cast %3 : vector<1x3x128xf32> to vector<3x128xf32>
    %c1_i32 = arith.constant 1 : i32
    %5 = arith.muli %arg0, %c1_i32 : i32
    %6 = arith.addi %5, %arg1 : i32
    %7 = arith.index_cast %6 : i32 to index
    %8 = memref.load %arg3[%7] : memref<2xi32, #tpu.memory_space<smem>>
    %9 = arith.addi %8, %arg2 : i32
    %c128_i32 = arith.constant 128 : i32
    %10 = arith.muli %9, %c128_i32 : i32
    %c0_3 = arith.constant 0 : index
    %c0_4 = arith.constant 0 : index
    %c0_5 = arith.constant 0 : index
    %11 = vector.load %arg4[%c0_3, %c0_4, %c0_5] : memref<1x1x128xi32, #tpu.memory_space<vmem>>, vector<1x1x128xi32>
    %12 = vector.shape_cast %11 : vector<1x1x128xi32> to vector<1x128xi32>
    %13 = vector.broadcast %10 : i32 to vector<1x128xi32>
    %14 = arith.subi %12, %13 : vector<1x128xi32>
    %c0_6 = arith.constant 0 : index
    %c0_7 = arith.constant 0 : index
    %c0_8 = arith.constant 0 : index
    %15 = vector.load %arg5[%c0_6, %c0_7, %c0_8] : memref<1x1x128xi32, #tpu.memory_space<vmem>>, vector<1x1x128xi32>
    %16 = vector.shape_cast %15 : vector<1x1x128xi32> to vector<1x128xi32>
    %17 = vector.broadcast %10 : i32 to vector<1x128xi32>
    %18 = arith.subi %16, %17 : vector<1x128xi32>
    %19 = tpu.iota {dimensions = array<i32: 0>} : vector<128x128xi32>
    %20 = vector.broadcast %14 : vector<1x128xi32> to vector<128x128xi32>
    %21 = arith.cmpi eq, %19, %20 : vector<128x128xi32>
    %22 = vector.broadcast %18 : vector<1x128xi32> to vector<128x128xi32>
    %23 = arith.cmpi eq, %19, %22 : vector<128x128xi32>
    %cst = arith.constant -1.000000e+00 : f32
    %cst_9 = arith.constant 0.000000e+00 : f32
    %24 = vector.broadcast %cst : f32 to vector<128x128xf32>
    %25 = vector.broadcast %cst_9 : f32 to vector<128x128xf32>
    %26 = arith.select %23, %24, %25 : vector<128x128xi1>, vector<128x128xf32>
    %cst_10 = arith.constant 1.000000e+00 : f32
    %27 = vector.broadcast %cst_10 : f32 to vector<128x128xf32>
    %28 = arith.select %21, %27, %26 : vector<128x128xi1>, vector<128x128xf32>
    %c0_11 = arith.constant 0 : index
    %c0_12 = arith.constant 0 : index
    %29 = vector.load %arg8[%c0_11, %c0_12] : memref<3x128xf32, #tpu.memory_space<vmem>>, vector<3x128xf32>
    %cst_13 = arith.constant dense<0.000000e+00> : vector<3x128xf32>
    %30 = tpu.matmul %4, %28, %cst_13 {dimension_numbers = #tpu.dot_dimension_numbers<[1], [0], [0], [1], [0, 0, 1, 1], [], []>, precision = #tpu.contract_precision<fp32>} : vector<3x128xf32>, vector<128x128xf32>, vector<3x128xf32> -> vector<3x128xf32>
    %31 = arith.addf %29, %30 : vector<3x128xf32>
    %c0_14 = arith.constant 0 : index
    %c0_15 = arith.constant 0 : index
    %32 = vector.load %arg8[%c0_14, %c0_15] : memref<3x128xf32, #tpu.memory_space<vmem>>, vector<3x128xf32>
    tpu.vector_store %arg8[%c0_14, %c0_15], %31 {strides = array<i32>} : memref<3x128xf32, #tpu.memory_space<vmem>>, vector<3x128xf32>,
    %c0_i32_16 = arith.constant 0 : i32
    %33 = arith.cmpi eq, %arg2, %c0_i32_16 : i32
    %34 = arith.extui %33 : i1 to i32
    %c0_i32_17 = arith.constant 0 : i32
    %35 = arith.cmpi ne, %34, %c0_i32_17 : i32
    scf.if %35 {
      %c0_18 = arith.constant 0 : index
      %c0_19 = arith.constant 0 : index
      %36 = vector.load %arg8[%c0_18, %c0_19] : memref<3x128xf32, #tpu.memory_space<vmem>>, vector<3x128xf32>
      %37 = arith.mulf %36, %36 : vector<3x128xf32>
      %cst_20 = arith.constant dense<0.000000e+00> : vector<128xf32>
      %38 = vector.multi_reduction <add>, %37, %cst_20 [0] : vector<3x128xf32> to vector<128xf32>
      %39 = vector.shape_cast %38 : vector<128xf32> to vector<1x128xf32>
      %c0_21 = arith.constant 0 : index
      %c0_22 = arith.constant 0 : index
      %c0_23 = arith.constant 0 : index
      %c0_24 = arith.constant 0 : index
      %40 = vector.load %arg7[%c0_21, %c0_22, %c0_23, %c0_24] : memref<1x1x1x128xf32, #tpu.memory_space<vmem>>, vector<1x1x1x128xf32>
      %41 = vector.shape_cast %40 : vector<1x1x1x128xf32> to vector<1x128xf32>
      %42 = vector.shape_cast %39 : vector<1x128xf32> to vector<1x1x1x128xf32>
      tpu.vector_store %arg7[%c0_21, %c0_22, %c0_23, %c0_24], %42 {strides = array<i32>} : memref<1x1x1x128xf32, #tpu.memory_space<vmem>>, vector<1x1x1x128xf32>,
    } else {
    }
    return
  }
  func.func @transform_0(%arg0: i32, %arg1: i32, %arg2: i32, %arg3: memref<2xi32, #tpu.memory_space<smem>>) -> (i32, i32, i32) {
    %c0_i32 = arith.constant 0 : i32
    %c0_i32_0 = arith.constant 0 : i32
    return %arg0, %c0_i32, %arg1 : i32, i32, i32
  }
  func.func @transform_1(%arg0: i32, %arg1: i32, %arg2: i32, %arg3: memref<2xi32, #tpu.memory_space<smem>>) -> (i32, i32, i32) {
    %c0_i32 = arith.constant 0 : i32
    %c0_i32_0 = arith.constant 0 : i32
    return %arg0, %c0_i32, %arg1 : i32, i32, i32
  }
  func.func @transform_2(%arg0: i32, %arg1: i32, %arg2: i32, %arg3: memref<2xi32, #tpu.memory_space<smem>>) -> (i32, i32, i32) {
    %c1_i32 = arith.constant 1 : i32
    %0 = arith.muli %arg0, %c1_i32 : i32
    %1 = arith.addi %0, %arg1 : i32
    %2 = arith.index_cast %1 : i32 to index
    %3 = memref.load %arg3[%2] : memref<2xi32, #tpu.memory_space<smem>>
    %4 = arith.addi %3, %arg2 : i32
    %c0_i32 = arith.constant 0 : i32
    %c0_i32_0 = arith.constant 0 : i32
    return %arg0, %c0_i32, %4 : i32, i32, i32
  }
  func.func @transform_3(%arg0: i32, %arg1: i32, %arg2: i32, %arg3: memref<2xi32, #tpu.memory_space<smem>>) -> (i32, i32, i32, i32) {
    %c0_i32 = arith.constant 0 : i32
    %c0_i32_0 = arith.constant 0 : i32
    %c0_i32_1 = arith.constant 0 : i32
    return %arg0, %arg1, %c0_i32, %c0_i32_0 : i32, i32, i32, i32
  }
}

</mosaic_0001>

<llo_original>
// kernel: tpu_custom_call.1
$region0: #{tpu_custom_call.1}
  #allocation0 [shape = 'u32[]', space=smem, size = 0x4, offset = 0x4, fixed_abs, tag = 'smem constant byte address 0x4 - core index']
  #allocation1 [shape = 'u32[144,128]{1,0:T(1,128)}', space=vmem, size = 0x12000, scoped, tag = 'internal scratch']
  #allocation2 [shape = 'f32[3,128]{1,0:T(4,128)}', space=vmem, size = 0x800, scoped, tag = 'scratch operand']
  #allocation3 [shape = 's32[1]{0}', space=sflag, size = 0x4, scoped, tag = 'scoped memory for tpu_custom_call.1']
  #allocation4 [shape = 'u8[512]{0}', space=smem, size = 0x200, scoped, tag = 'prefetched SMEM operand 0']
  %s0 = inlined_call_operand.vmem [shape: s32[2], index: 0, kind: input, shape index: {}]
  %s1 = inlined_call_operand.vmem [shape: s32[2,1,128], index: 1, kind: input, shape index: {}]
  %s2 = inlined_call_operand.vmem [shape: s32[2,1,128], index: 2, kind: input, shape index: {}]
  %s3 = inlined_call_operand.vmem [shape: f32[2,3,128], index: 3, kind: input, shape index: {}]
  %s4 = inlined_call_operand.hbm [shape: f32[2,1,1,128], index: 4, kind: output, shape index: {}]
  %s5 = sld [smem:[#allocation0]]
  $region53: #{tpu_custom_call.1} parent=0
    _
  %s7 = ssub.s32 1, %s5
  %s8 = scalar_select 0, %s7, %s5
  %s9 = sshll.u32 %s0, 4
  %s10 = int_to_ptr.vmem [resolvable:$true] %s9
  %12 = dma.vmem_to_smem %s10, 16, [#allocation4], [#allocation3]
  %13 = dma.done [#allocation3], 16
  %14 = sfence
  $region1: #{tpu_custom_call.1} parent=0
    #allocation5 [shape = 'u8[1024]{0}', space=vmem, size = 0x400, scoped, tag = 'output window, operand 0']
    #allocation6 [shape = 's32[2]{0}', space=sflag, size = 0x8, scoped, tag = 'scoped memory for tpu_custom_call.1']
    %15 = vsyncpa [#allocation6], 0
    %s16 = scalar_lea.sflag [#allocation6], 1
    %17 = vsyncpa %s16, 0
    loop: start=0, step=1, limit=4
    $region2: #{tpu_custom_call.1} parent=1 // loop_pre_header
      _
    $region3: #{tpu_custom_call.1} parent=1 // loop_header
      %s19 = sphi 0, %s23
      %p20 = scmp.ge.s32.totalorder %s19, 4
      %s26 = sphi 0, %s45
      %s27 = sphi 0, %s41
      %s28 = sphi 0, %s37
      %s29 = sphi 0, %s26
      %s30 = sphi 0, %s27
      %s31 = sphi 0, %s28
      %s32 = sphi 0, %s29
      %s33 = sphi 0, %s30
      %s34 = sphi 0, %s31
      %s50 = sphi 0, %s52
      %s53 = sphi 0, %s50
      %s54 = sphi 0, %s53
      %s70 = sphi 0, %s54
      %s78 = sphi 0, %s80
      %s81 = sphi 0, %s78
      %s82 = sphi 0, %s81
      %s98 = sphi 0, %s82
      %s112 = sphi 0, %s114
      %s115 = sphi 0, %s112
      %s116 = sphi 0, %s115
      %s132 = sphi 0, %s116
      %s140 = sphi 0, %s142
      %s143 = sphi 0, %s140
      %s144 = sphi 0, %s143
      %s160 = sphi 0, %s144
    $region4: #{tpu_custom_call.1} parent=1 // loop_header_branch
      %22 = sbr.rel (%p20) target = $region8
    $region5: #{tpu_custom_call.1} parent=1 // loop_body
      %s24 = ssub.s32 %s19, 1
      %s25 = ssub.s32 %s19, 2
      %s35 = sadd.s32 1, %s28
      %p36 = scmp.ge.s32.totalorder %s35, 1
      %s37 = scalar_select %p36, 0, %s35
      %s38 = sadd.s32 1, %s27
      %s39 = scalar_select %p36, %s38, %s27
      %p40 = scmp.ge.s32.totalorder %s39, 1
      %s41 = scalar_select %p40, 0, %s39
      %s42 = sadd.s32 1, %s26
      %s43 = scalar_select %p40, %s42, %s26
      %p44 = scmp.ge.s32.totalorder %s43, 2
      %s45 = scalar_select %p44, 0, %s43
      %s46 = ssub.s32 %s26, %s45
      %s47 = ssub.s32 %s27, %s41
      %s48 = sor.u32 %s46, %s47
      %p49 = scmp.eq.s32.totalorder %s48, 0
      %s51 = sadd.s32 %s50, 1
      %s52 = scalar_select %p49, %s50, %s51
      %p55 = pneg %p49
      %p56 = scmp.eq.s32.totalorder %s19, 1
      %p57 = por %p55, %p56
      %p58 = scmp.ne.s32.totalorder %s50, %s53
      %p59 = scmp.eq.s32.totalorder %s19, 0
      %p60 = por %p58, %p59
      %p61 = scmp.ne.s32.totalorder %s50, %s53
      %p62 = scmp.eq.s32.totalorder %s24, 1
      %p63 = por %p61, %p62
      %p64 = scmp.ne.s32.totalorder %s53, %s54
      %p65 = scmp.eq.s32.totalorder %s24, 0
      %p66 = por %p64, %p65
      %p67 = scmp.ne.s32.totalorder %s53, %s54
      %p68 = scmp.eq.s32.totalorder %s25, 1
      %p69 = por %p67, %p68
      %p71 = scmp.ne.s32.totalorder %s54, %s70
      %p72 = scmp.eq.s32.totalorder %s25, 0
      %p73 = por %p71, %p72
      %s74 = ssub.s32 %s26, %s45
      %s75 = ssub.s32 %s27, %s41
      %s76 = sor.u32 %s74, %s75
      %p77 = scmp.eq.s32.totalorder %s76, 0
      %s79 = sadd.s32 %s78, 1
      %s80 = scalar_select %p77, %s78, %s79
      %p83 = pneg %p77
      %p84 = scmp.eq.s32.totalorder %s19, 1
      %p85 = por %p83, %p84
      %p86 = scmp.ne.s32.totalorder %s78, %s81
      %p87 = scmp.eq.s32.totalorder %s19, 0
      %p88 = por %p86, %p87
      %p89 = scmp.ne.s32.totalorder %s78, %s81
      %p90 = scmp.eq.s32.totalorder %s24, 1
      %p91 = por %p89, %p90
      %p92 = scmp.ne.s32.totalorder %s81, %s82
      %p93 = scmp.eq.s32.totalorder %s24, 0
      %p94 = por %p92, %p93
      %p95 = scmp.ne.s32.totalorder %s81, %s82
      %p96 = scmp.eq.s32.totalorder %s25, 1
      %p97 = por %p95, %p96
      %p99 = scmp.ne.s32.totalorder %s82, %s98
      %p100 = scmp.eq.s32.totalorder %s25, 0
      %p101 = por %p99, %p100
      %s102 = sadd.s32 %s26, %s27
      %s103 = sld [smem:[#allocation4 + %s102]]
      %s104 = sadd.s32 %s103, %s28
      %s105 = sadd.s32 %s45, %s41
      %s106 = sld [smem:[#allocation4 + %s105]]
      %s107 = sadd.s32 %s106, %s37
      %s108 = ssub.s32 %s26, %s45
      %s109 = ssub.s32 %s104, %s107
      %s110 = sor.u32 %s108, %s109
      %p111 = scmp.eq.s32.totalorder %s110, 0
      %s113 = sadd.s32 %s112, 1
      %s114 = scalar_select %p111, %s112, %s113
      %p117 = pneg %p111
      %p118 = scmp.eq.s32.totalorder %s19, 1
      %p119 = por %p117, %p118
      %p120 = scmp.ne.s32.totalorder %s112, %s115
      %p121 = scmp.eq.s32.totalorder %s19, 0
      %p122 = por %p120, %p121
      %p123 = scmp.ne.s32.totalorder %s112, %s115
      %p124 = scmp.eq.s32.totalorder %s24, 1
      %p125 = por %p123, %p124
      %p126 = scmp.ne.s32.totalorder %s115, %s116
      %p127 = scmp.eq.s32.totalorder %s24, 0
      %p128 = por %p126, %p127
      %p129 = scmp.ne.s32.totalorder %s115, %s116
      %p130 = scmp.eq.s32.totalorder %s25, 1
      %p131 = por %p129, %p130
      %p133 = scmp.ne.s32.totalorder %s116, %s132
      %p134 = scmp.eq.s32.totalorder %s25, 0
      %p135 = por %p133, %p134
      %s136 = ssub.s32 %s26, %s45
      %s137 = ssub.s32 %s27, %s41
      %s138 = sor.u32 %s136, %s137
      %p139 = scmp.eq.s32.totalorder %s138, 0
      %s141 = sadd.s32 %s140, 1
      %s142 = scalar_select %p139, %s140, %s141
      %p145 = pneg %p139
      %p146 = scmp.eq.s32.totalorder %s19, 1
      %p147 = por %p145, %p146
      %p148 = scmp.ne.s32.totalorder %s140, %s143
      %p149 = scmp.eq.s32.totalorder %s19, 0
      %p150 = por %p148, %p149
      %p151 = scmp.ne.s32.totalorder %s140, %s143
      %p152 = scmp.eq.s32.totalorder %s24, 1
      %p153 = por %p151, %p152
      %p154 = scmp.ne.s32.totalorder %s143, %s144
      %p155 = scmp.eq.s32.totalorder %s24, 0
      %p156 = por %p154, %p155
      %p157 = scmp.ne.s32.totalorder %s143, %s144
      %p158 = scmp.eq.s32.totalorder %s25, 1
      %p159 = por %p157, %p158
      %p161 = scmp.ne.s32.totalorder %s144, %s160
      %p162 = scmp.eq.s32.totalorder %s25, 0
      %p163 = por %p161, %p162
      %p164 = scmp.le.s32.totalorder 1, %s19
      %p165 = scmp.lt.s32.totalorder %s19, 3
      %p166 = pnand %p164, %p165
      %p167 = pneg %p166
      // Predicated region
      $region9: #{tpu_custom_call.1} parent=5 // pred_check
        _
      $region10: #{tpu_custom_call.1} parent=5 // pred_check_branch
        %169 = sbr.rel (%p166) target = $region12
      $region11: #{tpu_custom_call.1} parent=5 // pred_region
        %s170 = ssub.s32 %s19, 1
      $region12: #{tpu_custom_call.1} parent=5 // pred_fallthru
        _
      %p171 = scmp.lt.s32.totalorder %s19, 2
      // Predicated region
      $region13: #{tpu_custom_call.1} parent=5 // pred_check
        %p172 = pneg %p171
      $region14: #{tpu_custom_call.1} parent=5 // pred_check_branch
        %174 = sbr.rel (%p172) target = $region16
      $region15: #{tpu_custom_call.1} parent=5 // pred_region
        // Predicated region
        $region17: #{tpu_custom_call.1} parent=15 // pred_check
          %p175 = pneg %p60
        $region18: #{tpu_custom_call.1} parent=15 // pred_check_branch
          %177 = sbr.rel (%p175) target = $region20
        $region19: #{tpu_custom_call.1} parent=15 // pred_region
          %p178 = scmp.lt.s32.totalorder %s26, 1
          %s179 = scalar_select %p178, %s26, 1
          %p180 = scmp.lt.s32.totalorder %s27, 0
          %s181 = scalar_select %p180, %s27, 0
          %s182 = sadd.s32 %s181, %s179
          %s183 = scalar_lea.vmem %s1, %s182
        $region20: #{tpu_custom_call.1} parent=15 // pred_fallthru
          _
        // Predicated region
        $region21: #{tpu_custom_call.1} parent=15 // pred_check
          %p184 = pneg %p88
        $region22: #{tpu_custom_call.1} parent=15 // pred_check_branch
          %186 = sbr.rel (%p184) target = $region24
        $region23: #{tpu_custom_call.1} parent=15 // pred_region
          %p187 = scmp.lt.s32.totalorder %s26, 1
          %s188 = scalar_select %p187, %s26, 1
          %p189 = scmp.lt.s32.totalorder %s27, 0
          %s190 = scalar_select %p189, %s27, 0
          %s191 = sadd.s32 %s190, %s188
          %s192 = scalar_lea.vmem %s2, %s191
        $region24: #{tpu_custom_call.1} parent=15 // pred_fallthru
          _
        // Predicated region
        $region25: #{tpu_custom_call.1} parent=15 // pred_check
          %p193 = pneg %p122
        $region26: #{tpu_custom_call.1} parent=15 // pred_check_branch
          %195 = sbr.rel (%p193) target = $region28
        $region27: #{tpu_custom_call.1} parent=15 // pred_region
          %s196 = sadd.s32 %s26, %s27
          %s197 = sld [smem:[#allocation4 + %s196]]
          %s198 = sadd.s32 %s197, %s28
          %p199 = scmp.lt.s32.totalorder %s26, 1
          %s200 = scalar_select %p199, %s26, 1
          %p201 = scmp.lt.s32.totalorder %s198, 0
          %s202 = scalar_select %p201, %s198, 0
          %s203 = sadd.s32 %s202, %s200
          %s204 = smul.addr %s203, 4
          %s205 = scalar_lea.vmem %s3, %s204
          %s206 = sadd.s32 %s26, %s27
          %s207 = sld [smem:[#allocation4 + %s206]]
          %s208 = sadd.s32 %s207, %s28
        $region28: #{tpu_custom_call.1} parent=15 // pred_fallthru
          _
      $region16: #{tpu_custom_call.1} parent=5 // pred_fallthru
        _
      %p209 = scmp.le.s32.totalorder 1, %s19
      %p210 = scmp.lt.s32.totalorder %s19, 3
      %p211 = pnand %p209, %p210
      %p212 = pneg %p211
      // Predicated region
      $region29: #{tpu_custom_call.1} parent=5 // pred_check
        _
      $region30: #{tpu_custom_call.1} parent=5 // pred_check_branch
        %214 = sbr.rel (%p211) target = $region32
      $region31: #{tpu_custom_call.1} parent=5 // pred_region
        %s215 = ssub.s32 %s19, 1
        %p216 = scmp.lt.s32.totalorder %s29, 1
        %s217 = scalar_select %p216, %s29, 1
        %p218 = scmp.lt.s32.totalorder %s30, 0
        %s219 = scalar_select %p218, %s30, 0
        %s220 = sadd.s32 %s219, %s217
        %s221 = scalar_lea.vmem %s1, %s220
        %p222 = pneg %p66
        %p223 = pneg %p63
        %p224 = scmp.lt.s32.totalorder %s29, 1
        %s225 = scalar_select %p224, %s29, 1
        %p226 = scmp.lt.s32.totalorder %s30, 0
        %s227 = scalar_select %p226, %s30, 0
        %s228 = sadd.s32 %s227, %s225
        %s229 = scalar_lea.vmem %s2, %s228
        %p230 = pneg %p94
        %p231 = pneg %p91
        %s232 = sadd.s32 %s29, %s30
        %s233 = sld [smem:[#allocation4 + %s232]]
        %s234 = sadd.s32 %s233, %s31
        %p235 = scmp.lt.s32.totalorder %s29, 1
        %s236 = scalar_select %p235, %s29, 1
        %p237 = scmp.lt.s32.totalorder %s234, 0
        %s238 = scalar_select %p237, %s234, 0
        %s239 = sadd.s32 %s238, %s236
        %s240 = smul.addr %s239, 4
        %s241 = scalar_lea.vmem %s3, %s240
        %p242 = pneg %p128
        %p243 = pneg %p125
        %p244 = pneg %p156
        %p245 = pneg %p153
        %s246 = sand.u32 %s143, 1
        %s247 = scalar_lea.sflag [#allocation6], %s246
        %s248 = sand.u32 %s143, 1
        %s249 = scalar_lea.vmem [#allocation5], %s248
        %p250 = scmp.lt.s32.totalorder %s29, 1
        %s251 = scalar_select %p250, %s29, 1
        %p252 = scmp.lt.s32.totalorder %s30, 0
        %s253 = scalar_select %p252, %s30, 0
        %s254 = sadd.s32 %s253, %s251
        %s255 = scalar_lea.vmem %s1, %s254
        %p256 = scmp.lt.s32.totalorder %s29, 1
        %s257 = scalar_select %p256, %s29, 1
        %p258 = scmp.lt.s32.totalorder %s30, 0
        %s259 = scalar_select %p258, %s30, 0
        %s260 = sadd.s32 %s259, %s257
        %s261 = scalar_lea.vmem %s2, %s260
        %s262 = sadd.s32 %s29, %s30
        %s263 = sld [smem:[#allocation4 + %s262]]
        %s264 = sadd.s32 %s263, %s31
        %p265 = scmp.lt.s32.totalorder %s29, 1
        %s266 = scalar_select %p265, %s29, 1
        %p267 = scmp.lt.s32.totalorder %s264, 0
        %s268 = scalar_select %p267, %s264, 0
        %s269 = sadd.s32 %s268, %s266
        %s270 = smul.addr %s269, 4
        %s271 = scalar_lea.vmem %s3, %s270
        %s272 = sadd.s32 %s29, %s30
        %s273 = sld [smem:[#allocation4 + %s272]]
        %s274 = sadd.s32 %s273, %s31
        %p275 = scmp.eq.s32.totalorder %s31, 0
        // Predicated region
        $region33: #{tpu_custom_call.1} parent=31 // pred_check
          %p276 = pneg %p275
        $region34: #{tpu_custom_call.1} parent=31 // pred_check_branch
          %278 = sbr.rel (%p276) target = $region36
        $region35: #{tpu_custom_call.1} parent=31 // pred_region
          %279 = vst [vmem:[#allocation2] sm:$0x7] 0.0
        $region36: #{tpu_custom_call.1} parent=31 // pred_fallthru
          _
        %v280 = vld [vmem:[%s271] sm:$0x7]
        %s281 = sadd.s32 %s29, %s30
        %s282 = sld [smem:[#allocation4 + %s281]]
        %s283 = sadd.s32 %s282, %s31
        %s284 = smul.u32 %s283, 128
        %v285 = vld [vmem:[%s255] sm:$0x1]
        %v286 = vstv %s284
        %v287 = vsub.s32 %v285, %v286
        %v288 = vld [vmem:[%s261] sm:$0x1]
        %v289 = vsub.s32 %v288, %v286
        %v290 = vlaneseq
        %v291 = vshrl.u32 %v290, 7
        %v292 = vadd.s32 %v291, 8
        %v293 = vadd.s32 %v291, 16
        %v294 = vadd.s32 %v291, 24
        %v295 = vadd.s32 %v291, 32
        %v296 = vadd.s32 %v291, 40
        %v297 = vadd.s32 %v291, 48
        %v298 = vadd.s32 %v291, 56
        %v299 = vadd.s32 %v291, 64
        %v300 = vadd.s32 %v291, 72
        %v301 = vadd.s32 %v291, 80
        %v302 = vadd.s32 %v291, 88
        %v303 = vadd.s32 %v291, 96
        %v304 = vadd.s32 %v291, 104
        %v305 = vadd.s32 %v291, 112
        %v306 = vadd.s32 %v291, 120
        %v307 = vlaneseq
        %v308 = vshrl.u32 %v307, 7
        %v309 = vsub.s32 0, %v308
        %v310 = vrot.slane %v287, %v309
        %vm311 = vcmp.eq.s32.totalorder %v291, %v310
        %vm312 = vcmp.eq.s32.totalorder %v292, %v310
        %vm313 = vcmp.eq.s32.totalorder %v293, %v310
        %vm314 = vcmp.eq.s32.totalorder %v294, %v310
        %vm315 = vcmp.eq.s32.totalorder %v295, %v310
        %vm316 = vcmp.eq.s32.totalorder %v296, %v310
        %vm317 = vcmp.eq.s32.totalorder %v297, %v310
        %vm318 = vcmp.eq.s32.totalorder %v298, %v310
        %vm319 = vcmp.eq.s32.totalorder %v299, %v310
        %vm320 = vcmp.eq.s32.totalorder %v300, %v310
        %vm321 = vcmp.eq.s32.totalorder %v301, %v310
        %vm322 = vcmp.eq.s32.totalorder %v302, %v310
        %vm323 = vcmp.eq.s32.totalorder %v303, %v310
        %vm324 = vcmp.eq.s32.totalorder %v304, %v310
        %vm325 = vcmp.eq.s32.totalorder %v305, %v310
        %vm326 = vcmp.eq.s32.totalorder %v306, %v310
        %v327 = vlaneseq
        %v328 = vshrl.u32 %v327, 7
        %v329 = vsub.s32 0, %v328
        %v330 = vrot.slane %v289, %v329
        %vm331 = vcmp.eq.s32.totalorder %v291, %v330
        %vm332 = vcmp.eq.s32.totalorder %v292, %v330
        %vm333 = vcmp.eq.s32.totalorder %v293, %v330
        %vm334 = vcmp.eq.s32.totalorder %v294, %v330
        %vm335 = vcmp.eq.s32.totalorder %v295, %v330
        %vm336 = vcmp.eq.s32.totalorder %v296, %v330
        %vm337 = vcmp.eq.s32.totalorder %v297, %v330
        %vm338 = vcmp.eq.s32.totalorder %v298, %v330
        %vm339 = vcmp.eq.s32.totalorder %v299, %v330
        %vm340 = vcmp.eq.s32.totalorder %v300, %v330
        %vm341 = vcmp.eq.s32.totalorder %v301, %v330
        %vm342 = vcmp.eq.s32.totalorder %v302, %v330
        %vm343 = vcmp.eq.s32.totalorder %v303, %v330
        %vm344 = vcmp.eq.s32.totalorder %v304, %v330
        %vm345 = vcmp.eq.s32.totalorder %v305, %v330
        %vm346 = vcmp.eq.s32.totalorder %v306, %v330
        %v347 = vsel %vm331, -1.0, 0.0
        %v348 = vsel %vm332, -1.0, 0.0
        %v349 = vsel %vm333, -1.0, 0.0
        %v350 = vsel %vm334, -1.0, 0.0
        %v351 = vsel %vm335, -1.0, 0.0
        %v352 = vsel %vm336, -1.0, 0.0
        %v353 = vsel %vm337, -1.0, 0.0
        %v354 = vsel %vm338, -1.0, 0.0
        %v355 = vsel %vm339, -1.0, 0.0
        %v356 = vsel %vm340, -1.0, 0.0
        %v357 = vsel %vm341, -1.0, 0.0
        %v358 = vsel %vm342, -1.0, 0.0
        %v359 = vsel %vm343, -1.0, 0.0
        %v360 = vsel %vm344, -1.0, 0.0
        %v361 = vsel %vm345, -1.0, 0.0
        %v362 = vsel %vm346, -1.0, 0.0
        %v363 = vsel %vm311, 1.0, %v347
        %v364 = vsel %vm312, 1.0, %v348
        %v365 = vsel %vm313, 1.0, %v349
        %v366 = vsel %vm314, 1.0, %v350
        %v367 = vsel %vm315, 1.0, %v351
        %v368 = vsel %vm316, 1.0, %v352
        %v369 = vsel %vm317, 1.0, %v353
        %v370 = vsel %vm318, 1.0, %v354
        %v371 = vsel %vm319, 1.0, %v355
        %v372 = vsel %vm320, 1.0, %v356
        %v373 = vsel %vm321, 1.0, %v357
        %v374 = vsel %vm322, 1.0, %v358
        %v375 = vsel %vm323, 1.0, %v359
        %v376 = vsel %vm324, 1.0, %v360
        %v377 = vsel %vm325, 1.0, %v361
        %v378 = vsel %vm326, 1.0, %v362
        %v379 = vld [vmem:[#allocation2] sm:$0x7]
        %380 = vmatprep.subr.mxu0 0.0
        %381 = vmatpush1.msra.mxu0 %v363
        %382 = vmatprep.subr.mxu0 0.0
        %383 = vmatpush1.msra.mxu0 %v364
        %384 = vmatprep.subr.mxu0 0.0
        %385 = vmatpush1.msra.mxu0 %v365
        %386 = vmatprep.subr.mxu0 0.0
        %387 = vmatpush1.msra.mxu0 %v366
        %388 = vmatprep.subr.mxu0 0.0
        %389 = vmatpush1.msra.mxu0 %v367
        %390 = vmatprep.subr.mxu0 0.0
        %391 = vmatpush1.msra.mxu0 %v368
        %392 = vmatprep.subr.mxu0 0.0
        %393 = vmatpush1.msra.mxu0 %v369
        %394 = vmatprep.subr.mxu0 0.0
        %395 = vmatpush1.msra.mxu0 %v370
        %396 = vmatprep.subr.mxu0 0.0
        %397 = vmatpush1.msra.mxu0 %v371
        %398 = vmatprep.subr.mxu0 0.0
        %399 = vmatpush1.msra.mxu0 %v372
        %400 = vmatprep.subr.mxu0 0.0
        %401 = vmatpush1.msra.mxu0 %v373
        %402 = vmatprep.subr.mxu0 0.0
        %403 = vmatpush1.msra.mxu0 %v374
        %404 = vmatprep.subr.mxu0 0.0
        %405 = vmatpush1.msra.mxu0 %v375
        %406 = vmatprep.subr.mxu0 0.0
        %407 = vmatpush1.msra.mxu0 %v376
        %408 = vmatprep.subr.mxu0 0.0
        %409 = vmatpush1.msra.mxu0 %v377
        %410 = vmatprep.subr.mxu0 0.0
        %411 = vmatpush1.msra.mxu0 %v378
        %412 = vmatprep.subr.mxu0 0.0
        %413 = vmatpush1.msra.mxu0 0.0
        %414 = vmatprep.subr.mxu0 0.0
        %415 = vmatpush1.msra.mxu0 0.0
        %416 = vmatprep.subr.mxu0 0.0
        %417 = vmatpush1.msra.mxu0 0.0
        %418 = vmatprep.subr.mxu0 0.0
        %419 = vmatpush1.msra.mxu0 0.0
        %420 = vmatprep.subr.mxu0 0.0
        %421 = vmatpush1.msra.mxu0 0.0
        %422 = vmatprep.subr.mxu0 0.0
        %423 = vmatpush1.msra.mxu0 0.0
        %424 = vmatprep.subr.mxu0 0.0
        %425 = vmatpush1.msra.mxu0 0.0
        %426 = vmatprep.subr.mxu0 0.0
        %427 = vmatpush1.msra.mxu0 0.0
        %428 = vmatprep.subr.mxu0 0.0
        %429 = vmatpush1.msra.mxu0 0.0
        %430 = vmatprep.subr.mxu0 0.0
        %431 = vmatpush1.msra.mxu0 0.0
        %432 = vmatprep.subr.mxu0 0.0
        %433 = vmatpush1.msra.mxu0 0.0
        %434 = vmatprep.subr.mxu0 0.0
        %435 = vmatpush1.msra.mxu0 0.0
        %436 = vmatprep.subr.mxu0 0.0
        %437 = vmatpush1.msra.mxu0 0.0
        %438 = vmatprep.subr.mxu0 0.0
        %439 = vmatpush1.msra.mxu0 0.0
        %440 = vmatprep.subr.mxu0 0.0
        %441 = vmatpush1.msra.mxu0 0.0
        %442 = vmatprep.subr.mxu0 0.0
        %443 = vmatpush1.msra.mxu0 0.0
        %444 = vmatprep.mubr.f32.mxu0 0.0
        %v445 = vand.u32 %v280, 4294901760
        %v446 = vsub.f32 %v280, %v445
        %v447 = vand.u32 %v446, 4294901760
        %v448 = vsub.f32 %v446, %v447
        %v449 = vand.u32 %v448, 4294901760
        %450 = vmatmul.mubr.f32.gmra.mrb[0].mxu0 %v449
        %v451 = vpop.f32.mrb[0].mxu0
        %v452 = vadd.f32 0.0, %v451
        %v453 = vpop.f32.mrb[0].mxu0
        %454 = vdwg.mxu0
        %455 = vmatprep.subr.mxu0 0.0
        %v456 = vsub.f32 %v363, %v363
        %v457 = vand.u32 %v456, 4294901760
        %v458 = vsub.f32 %v456, %v457
        %v459 = vand.u32 %v458, 4294901760
        %460 = vmatpush1.msra.mxu0 %v459
        %461 = vmatprep.subr.mxu0 0.0
        %v462 = vsub.f32 %v364, %v364
        %v463 = vand.u32 %v462, 4294901760
        %v464 = vsub.f32 %v462, %v463
        %v465 = vand.u32 %v464, 4294901760
        %466 = vmatpush1.msra.mxu0 %v465
        %467 = vmatprep.subr.mxu0 0.0
        %v468 = vsub.f32 %v365, %v365
        %v469 = vand.u32 %v468, 4294901760
        %v470 = vsub.f32 %v468, %v469
        %v471 = vand.u32 %v470, 4294901760
        %472 = vmatpush1.msra.mxu0 %v471
        %473 = vmatprep.subr.mxu0 0.0
        %v474 = vsub.f32 %v366, %v366
        %v475 = vand.u32 %v474, 4294901760
        %v476 = vsub.f32 %v474, %v475
        %v477 = vand.u32 %v476, 4294901760
        %478 = vmatpush1.msra.mxu0 %v477
        %479 = vmatprep.subr.mxu0 0.0
        %v480 = vsub.f32 %v367, %v367
        %v481 = vand.u32 %v480, 4294901760
        %v482 = vsub.f32 %v480, %v481
        %v483 = vand.u32 %v482, 4294901760
        %484 = vmatpush1.msra.mxu0 %v483
        %485 = vmatprep.subr.mxu0 0.0
        %v486 = vsub.f32 %v368, %v368
        %v487 = vand.u32 %v486, 4294901760
        %v488 = vsub.f32 %v486, %v487
        %v489 = vand.u32 %v488, 4294901760
        %490 = vmatpush1.msra.mxu0 %v489
        %491 = vmatprep.subr.mxu0 0.0
        %v492 = vsub.f32 %v369, %v369
        %v493 = vand.u32 %v492, 4294901760
        %v494 = vsub.f32 %v492, %v493
        %v495 = vand.u32 %v494, 4294901760
        %496 = vmatpush1.msra.mxu0 %v495
        %497 = vmatprep.subr.mxu0 0.0
        %v498 = vsub.f32 %v370, %v370
        %v499 = vand.u32 %v498, 4294901760
        %v500 = vsub.f32 %v498, %v499
        %v501 = vand.u32 %v500, 4294901760
        %502 = vmatpush1.msra.mxu0 %v501
        %503 = vmatprep.subr.mxu0 0.0
        %v504 = vsub.f32 %v371, %v371
        %v505 = vand.u32 %v504, 4294901760
        %v506 = vsub.f32 %v504, %v505
        %v507 = vand.u32 %v506, 4294901760
        %508 = vmatpush1.msra.mxu0 %v507
        %509 = vmatprep.subr.mxu0 0.0
        %v510 = vsub.f32 %v372, %v372
        %v511 = vand.u32 %v510, 4294901760
        %v512 = vsub.f32 %v510, %v511
        %v513 = vand.u32 %v512, 4294901760
        %514 = vmatpush1.msra.mxu0 %v513
        %515 = vmatprep.subr.mxu0 0.0
        %v516 = vsub.f32 %v373, %v373
        %v517 = vand.u32 %v516, 4294901760
        %v518 = vsub.f32 %v516, %v517
        %v519 = vand.u32 %v518, 4294901760
        %520 = vmatpush1.msra.mxu0 %v519
        %521 = vmatprep.subr.mxu0 0.0
        %v522 = vsub.f32 %v374, %v374
        %v523 = vand.u32 %v522, 4294901760
        %v524 = vsub.f32 %v522, %v523
        %v525 = vand.u32 %v524, 4294901760
        %526 = vmatpush1.msra.mxu0 %v525
        %527 = vmatprep.subr.mxu0 0.0
        %v528 = vsub.f32 %v375, %v375
        %v529 = vand.u32 %v528, 4294901760
        %v530 = vsub.f32 %v528, %v529
        %v531 = vand.u32 %v530, 4294901760
        %532 = vmatpush1.msra.mxu0 %v531
        %533 = vmatprep.subr.mxu0 0.0
        %v534 = vsub.f32 %v376, %v376
        %v535 = vand.u32 %v534, 4294901760
        %v536 = vsub.f32 %v534, %v535
        %v537 = vand.u32 %v536, 4294901760
        %538 = vmatpush1.msra.mxu0 %v537
        %539 = vmatprep.subr.mxu0 0.0
        %v540 = vsub.f32 %v377, %v377
        %v541 = vand.u32 %v540, 4294901760
        %v542 = vsub.f32 %v540, %v541
        %v543 = vand.u32 %v542, 4294901760
        %544 = vmatpush1.msra.mxu0 %v543
        %545 = vmatprep.subr.mxu0 0.0
        %v546 = vsub.f32 %v378, %v378
        %v547 = vand.u32 %v546, 4294901760
        %v548 = vsub.f32 %v546, %v547
        %v549 = vand.u32 %v548, 4294901760
        %550 = vmatpush1.msra.mxu0 %v549
        %551 = vmatprep.subr.mxu0 0.0
        %552 = vmatpush1.msra.mxu0 0.0
        %553 = vmatprep.subr.mxu0 0.0
        %554 = vmatpush1.msra.mxu0 0.0
        %555 = vmatprep.subr.mxu0 0.0
        %556 = vmatpush1.msra.mxu0 0.0
        %557 = vmatprep.subr.mxu0 0.0
        %558 = vmatpush1.msra.mxu0 0.0
        %559 = vmatprep.subr.mxu0 0.0
        %560 = vmatpush1.msra.mxu0 0.0
        %561 = vmatprep.subr.mxu0 0.0
        %562 = vmatpush1.msra.mxu0 0.0
        %563 = vmatprep.subr.mxu0 0.0
        %564 = vmatpush1.msra.mxu0 0.0
        %565 = vmatprep.subr.mxu0 0.0
        %566 = vmatpush1.msra.mxu0 0.0
        %567 = vmatprep.subr.mxu0 0.0
        %568 = vmatpush1.msra.mxu0 0.0
        %569 = vmatprep.subr.mxu0 0.0
        %570 = vmatpush1.msra.mxu0 0.0
        %571 = vmatprep.subr.mxu0 0.0
        %572 = vmatpush1.msra.mxu0 0.0
        %573 = vmatprep.subr.mxu0 0.0
        %574 = vmatpush1.msra.mxu0 0.0
        %575 = vmatprep.subr.mxu0 0.0
        %576 = vmatpush1.msra.mxu0 0.0
        %577 = vmatprep.subr.mxu0 0.0
        %578 = vmatpush1.msra.mxu0 0.0
        %579 = vmatprep.subr.mxu0 0.0
        %580 = vmatpush1.msra.mxu0 0.0
        %581 = vmatprep.subr.mxu0 0.0
        %582 = vmatpush1.msra.mxu0 0.0
        %583 = vmatprep.mubr.f32.mxu0 0.0
        %v584 = vand.u32 %v280, 4294901760
        %585 = vmatmul.mubr.f32.gmra.mrb[0].mxu0 %v584
        %v586 = vpop.f32.mrb[0].mxu0
        %v587 = vadd.f32 %v452, %v586
        %v588 = vpop.f32.mrb[0].mxu0
        %589 = vdwg.mxu0
        %590 = vmatprep.subr.mxu0 0.0
        %v591 = vsub.f32 %v363, %v363
        %592 = vmatpush1.msra.mxu0 %v591
        %593 = vmatprep.subr.mxu0 0.0
        %v594 = vsub.f32 %v364, %v364
        %595 = vmatpush1.msra.mxu0 %v594
        %596 = vmatprep.subr.mxu0 0.0
        %v597 = vsub.f32 %v365, %v365
        %598 = vmatpush1.msra.mxu0 %v597
        %599 = vmatprep.subr.mxu0 0.0
        %v600 = vsub.f32 %v366, %v366
        %601 = vmatpush1.msra.mxu0 %v600
        %602 = vmatprep.subr.mxu0 0.0
        %v603 = vsub.f32 %v367, %v367
        %604 = vmatpush1.msra.mxu0 %v603
        %605 = vmatprep.subr.mxu0 0.0
        %v606 = vsub.f32 %v368, %v368
        %607 = vmatpush1.msra.mxu0 %v606
        %608 = vmatprep.subr.mxu0 0.0
        %v609 = vsub.f32 %v369, %v369
        %610 = vmatpush1.msra.mxu0 %v609
        %611 = vmatprep.subr.mxu0 0.0
        %v612 = vsub.f32 %v370, %v370
        %613 = vmatpush1.msra.mxu0 %v612
        %614 = vmatprep.subr.mxu0 0.0
        %v615 = vsub.f32 %v371, %v371
        %616 = vmatpush1.msra.mxu0 %v615
        %617 = vmatprep.subr.mxu0 0.0
        %v618 = vsub.f32 %v372, %v372
        %619 = vmatpush1.msra.mxu0 %v618
        %620 = vmatprep.subr.mxu0 0.0
        %v621 = vsub.f32 %v373, %v373
        %622 = vmatpush1.msra.mxu0 %v621
        %623 = vmatprep.subr.mxu0 0.0
        %v624 = vsub.f32 %v374, %v374
        %625 = vmatpush1.msra.mxu0 %v624
        %626 = vmatprep.subr.mxu0 0.0
        %v627 = vsub.f32 %v375, %v375
        %628 = vmatpush1.msra.mxu0 %v627
        %629 = vmatprep.subr.mxu0 0.0
        %v630 = vsub.f32 %v376, %v376
        %631 = vmatpush1.msra.mxu0 %v630
        %632 = vmatprep.subr.mxu0 0.0
        %v633 = vsub.f32 %v377, %v377
        %634 = vmatpush1.msra.mxu0 %v633
        %635 = vmatprep.subr.mxu0 0.0
        %v636 = vsub.f32 %v378, %v378
        %637 = vmatpush1.msra.mxu0 %v636
        %638 = vmatprep.subr.mxu0 0.0
        %639 = vmatpush1.msra.mxu0 0.0
        %640 = vmatprep.subr.mxu0 0.0
        %641 = vmatpush1.msra.mxu0 0.0
        %642 = vmatprep.subr.mxu0 0.0
        %643 = vmatpush1.msra.mxu0 0.0
        %644 = vmatprep.subr.mxu0 0.0
        %645 = vmatpush1.msra.mxu0 0.0
        %646 = vmatprep.subr.mxu0 0.0
        %647 = vmatpush1.msra.mxu0 0.0
        %648 = vmatprep.subr.mxu0 0.0
        %649 = vmatpush1.msra.mxu0 0.0
        %650 = vmatprep.subr.mxu0 0.0
        %651 = vmatpush1.msra.mxu0 0.0
        %652 = vmatprep.subr.mxu0 0.0
        %653 = vmatpush1.msra.mxu0 0.0
        %654 = vmatprep.subr.mxu0 0.0
        %655 = vmatpush1.msra.mxu0 0.0
        %656 = vmatprep.subr.mxu0 0.0
        %657 = vmatpush1.msra.mxu0 0.0
        %658 = vmatprep.subr.mxu0 0.0
        %659 = vmatpush1.msra.mxu0 0.0
        %660 = vmatprep.subr.mxu0 0.0
        %661 = vmatpush1.msra.mxu0 0.0
        %662 = vmatprep.subr.mxu0 0.0
        %663 = vmatpush1.msra.mxu0 0.0
        %664 = vmatprep.subr.mxu0 0.0
        %665 = vmatpush1.msra.mxu0 0.0
        %666 = vmatprep.subr.mxu0 0.0
        %667 = vmatpush1.msra.mxu0 0.0
        %668 = vmatprep.subr.mxu0 0.0
        %669 = vmatpush1.msra.mxu0 0.0
        %670 = vmatprep.mubr.f32.mxu0 0.0
        %v671 = vand.u32 %v280, 4294901760
        %v672 = vsub.f32 %v280, %v671
        %673 = vmatmul.mubr.f32.gmra.mrb[0].mxu0 %v672
        %v674 = vpop.f32.mrb[0].mxu0
        %v675 = vadd.f32 %v587, %v674
        %v676 = vpop.f32.mrb[0].mxu0
        %677 = vdwg.mxu0
        %678 = vmatprep.subr.mxu0 0.0
        %679 = vmatpush1.msra.mxu0 %v363
        %680 = vmatprep.subr.mxu0 0.0
        %681 = vmatpush1.msra.mxu0 %v364
        %682 = vmatprep.subr.mxu0 0.0
        %683 = vmatpush1.msra.mxu0 %v365
        %684 = vmatprep.subr.mxu0 0.0
        %685 = vmatpush1.msra.mxu0 %v366
        %686 = vmatprep.subr.mxu0 0.0
        %687 = vmatpush1.msra.mxu0 %v367
        %688 = vmatprep.subr.mxu0 0.0
        %689 = vmatpush1.msra.mxu0 %v368
        %690 = vmatprep.subr.mxu0 0.0
        %691 = vmatpush1.msra.mxu0 %v369
        %692 = vmatprep.subr.mxu0 0.0
        %693 = vmatpush1.msra.mxu0 %v370
        %694 = vmatprep.subr.mxu0 0.0
        %695 = vmatpush1.msra.mxu0 %v371
        %696 = vmatprep.subr.mxu0 0.0
        %697 = vmatpush1.msra.mxu0 %v372
        %698 = vmatprep.subr.mxu0 0.0
        %699 = vmatpush1.msra.mxu0 %v373
        %700 = vmatprep.subr.mxu0 0.0
        %701 = vmatpush1.msra.mxu0 %v374
        %702 = vmatprep.subr.mxu0 0.0
        %703 = vmatpush1.msra.mxu0 %v375
        %704 = vmatprep.subr.mxu0 0.0
        %705 = vmatpush1.msra.mxu0 %v376
        %706 = vmatprep.subr.mxu0 0.0
        %707 = vmatpush1.msra.mxu0 %v377
        %708 = vmatprep.subr.mxu0 0.0
        %709 = vmatpush1.msra.mxu0 %v378
        %710 = vmatprep.subr.mxu0 0.0
        %711 = vmatpush1.msra.mxu0 0.0
        %712 = vmatprep.subr.mxu0 0.0
        %713 = vmatpush1.msra.mxu0 0.0
        %714 = vmatprep.subr.mxu0 0.0
        %715 = vmatpush1.msra.mxu0 0.0
        %716 = vmatprep.subr.mxu0 0.0
        %717 = vmatpush1.msra.mxu0 0.0
        %718 = vmatprep.subr.mxu0 0.0
        %719 = vmatpush1.msra.mxu0 0.0
        %720 = vmatprep.subr.mxu0 0.0
        %721 = vmatpush1.msra.mxu0 0.0
        %722 = vmatprep.subr.mxu0 0.0
        %723 = vmatpush1.msra.mxu0 0.0
        %724 = vmatprep.subr.mxu0 0.0
        %725 = vmatpush1.msra.mxu0 0.0
        %726 = vmatprep.subr.mxu0 0.0
        %727 = vmatpush1.msra.mxu0 0.0
        %728 = vmatprep.subr.mxu0 0.0
        %729 = vmatpush1.msra.mxu0 0.0
        %730 = vmatprep.subr.mxu0 0.0
        %731 = vmatpush1.msra.mxu0 0.0
        %732 = vmatprep.subr.mxu0 0.0
        %733 = vmatpush1.msra.mxu0 0.0
        %734 = vmatprep.subr.mxu0 0.0
        %735 = vmatpush1.msra.mxu0 0.0
        %736 = vmatprep.subr.mxu0 0.0
        %737 = vmatpush1.msra.mxu0 0.0
        %738 = vmatprep.subr.mxu0 0.0
        %739 = vmatpush1.msra.mxu0 0.0
        %740 = vmatprep.subr.mxu0 0.0
        %741 = vmatpush1.msra.mxu0 0.0
        %742 = vmatprep.mubr.f32.mxu0 0.0
        %v743 = vand.u32 %v280, 4294901760
        %v744 = vsub.f32 %v280, %v743
        %v745 = vand.u32 %v744, 4294901760
        %746 = vmatmul.mubr.f32.gmra.mrb[0].mxu0 %v745
        %v747 = vpop.f32.mrb[0].mxu0
        %v748 = vadd.f32 %v675, %v747
        %v749 = vpop.f32.mrb[0].mxu0
        %750 = vdwg.mxu0
        %751 = vmatprep.subr.mxu0 0.0
        %v752 = vsub.f32 %v363, %v363
        %v753 = vand.u32 %v752, 4294901760
        %754 = vmatpush1.msra.mxu0 %v753
        %755 = vmatprep.subr.mxu0 0.0
        %v756 = vsub.f32 %v364, %v364
        %v757 = vand.u32 %v756, 4294901760
        %758 = vmatpush1.msra.mxu0 %v757
        %759 = vmatprep.subr.mxu0 0.0
        %v760 = vsub.f32 %v365, %v365
        %v761 = vand.u32 %v760, 4294901760
        %762 = vmatpush1.msra.mxu0 %v761
        %763 = vmatprep.subr.mxu0 0.0
        %v764 = vsub.f32 %v366, %v366
        %v765 = vand.u32 %v764, 4294901760
        %766 = vmatpush1.msra.mxu0 %v765
        %767 = vmatprep.subr.mxu0 0.0
        %v768 = vsub.f32 %v367, %v367
        %v769 = vand.u32 %v768, 4294901760
        %770 = vmatpush1.msra.mxu0 %v769
        %771 = vmatprep.subr.mxu0 0.0
        %v772 = vsub.f32 %v368, %v368
        %v773 = vand.u32 %v772, 4294901760
        %774 = vmatpush1.msra.mxu0 %v773
        %775 = vmatprep.subr.mxu0 0.0
        %v776 = vsub.f32 %v369, %v369
        %v777 = vand.u32 %v776, 4294901760
        %778 = vmatpush1.msra.mxu0 %v777
        %779 = vmatprep.subr.mxu0 0.0
        %v780 = vsub.f32 %v370, %v370
        %v781 = vand.u32 %v780, 4294901760
        %782 = vmatpush1.msra.mxu0 %v781
        %783 = vmatprep.subr.mxu0 0.0
        %v784 = vsub.f32 %v371, %v371
        %v785 = vand.u32 %v784, 4294901760
        %786 = vmatpush1.msra.mxu0 %v785
        %787 = vmatprep.subr.mxu0 0.0
        %v788 = vsub.f32 %v372, %v372
        %v789 = vand.u32 %v788, 4294901760
        %790 = vmatpush1.msra.mxu0 %v789
        %791 = vmatprep.subr.mxu0 0.0
        %v792 = vsub.f32 %v373, %v373
        %v793 = vand.u32 %v792, 4294901760
        %794 = vmatpush1.msra.mxu0 %v793
        %795 = vmatprep.subr.mxu0 0.0
        %v796 = vsub.f32 %v374, %v374
        %v797 = vand.u32 %v796, 4294901760
        %798 = vmatpush1.msra.mxu0 %v797
        %799 = vmatprep.subr.mxu0 0.0
        %v800 = vsub.f32 %v375, %v375
        %v801 = vand.u32 %v800, 4294901760
        %802 = vmatpush1.msra.mxu0 %v801
        %803 = vmatprep.subr.mxu0 0.0
        %v804 = vsub.f32 %v376, %v376
        %v805 = vand.u32 %v804, 4294901760
        %806 = vmatpush1.msra.mxu0 %v805
        %807 = vmatprep.subr.mxu0 0.0
        %v808 = vsub.f32 %v377, %v377
        %v809 = vand.u32 %v808, 4294901760
        %810 = vmatpush1.msra.mxu0 %v809
        %811 = vmatprep.subr.mxu0 0.0
        %v812 = vsub.f32 %v378, %v378
        %v813 = vand.u32 %v812, 4294901760
        %814 = vmatpush1.msra.mxu0 %v813
        %815 = vmatprep.subr.mxu0 0.0
        %816 = vmatpush1.msra.mxu0 0.0
        %817 = vmatprep.subr.mxu0 0.0
        %818 = vmatpush1.msra.mxu0 0.0
        %819 = vmatprep.subr.mxu0 0.0
        %820 = vmatpush1.msra.mxu0 0.0
        %821 = vmatprep.subr.mxu0 0.0
        %822 = vmatpush1.msra.mxu0 0.0
        %823 = vmatprep.subr.mxu0 0.0
        %824 = vmatpush1.msra.mxu0 0.0
        %825 = vmatprep.subr.mxu0 0.0
        %826 = vmatpush1.msra.mxu0 0.0
        %827 = vmatprep.subr.mxu0 0.0
        %828 = vmatpush1.msra.mxu0 0.0
        %829 = vmatprep.subr.mxu0 0.0
        %830 = vmatpush1.msra.mxu0 0.0
        %831 = vmatprep.subr.mxu0 0.0
        %832 = vmatpush1.msra.mxu0 0.0
        %833 = vmatprep.subr.mxu0 0.0
        %834 = vmatpush1.msra.mxu0 0.0
        %835 = vmatprep.subr.mxu0 0.0
        %836 = vmatpush1.msra.mxu0 0.0
        %837 = vmatprep.subr.mxu0 0.0
        %838 = vmatpush1.msra.mxu0 0.0
        %839 = vmatprep.subr.mxu0 0.0
        %840 = vmatpush1.msra.mxu0 0.0
        %841 = vmatprep.subr.mxu0 0.0
        %842 = vmatpush1.msra.mxu0 0.0
        %843 = vmatprep.subr.mxu0 0.0
        %844 = vmatpush1.msra.mxu0 0.0
        %845 = vmatprep.subr.mxu0 0.0
        %846 = vmatpush1.msra.mxu0 0.0
        %847 = vmatprep.mubr.f32.mxu0 0.0
        %v848 = vand.u32 %v280, 4294901760
        %849 = vmatmul.mubr.f32.gmra.mrb[0].mxu0 %v848
        %v850 = vpop.f32.mrb[0].mxu0
        %v851 = vadd.f32 %v748, %v850
        %v852 = vpop.f32.mrb[0].mxu0
        %853 = vdwg.mxu0
        %854 = vmatprep.subr.mxu0 0.0
        %855 = vmatpush1.msra.mxu0 %v363
        %856 = vmatprep.subr.mxu0 0.0
        %857 = vmatpush1.msra.mxu0 %v364
        %858 = vmatprep.subr.mxu0 0.0
        %859 = vmatpush1.msra.mxu0 %v365
        %860 = vmatprep.subr.mxu0 0.0
        %861 = vmatpush1.msra.mxu0 %v366
        %862 = vmatprep.subr.mxu0 0.0
        %863 = vmatpush1.msra.mxu0 %v367
        %864 = vmatprep.subr.mxu0 0.0
        %865 = vmatpush1.msra.mxu0 %v368
        %866 = vmatprep.subr.mxu0 0.0
        %867 = vmatpush1.msra.mxu0 %v369
        %868 = vmatprep.subr.mxu0 0.0
        %869 = vmatpush1.msra.mxu0 %v370
        %870 = vmatprep.subr.mxu0 0.0
        %871 = vmatpush1.msra.mxu0 %v371
        %872 = vmatprep.subr.mxu0 0.0
        %873 = vmatpush1.msra.mxu0 %v372
        %874 = vmatprep.subr.mxu0 0.0
        %875 = vmatpush1.msra.mxu0 %v373
        %876 = vmatprep.subr.mxu0 0.0
        %877 = vmatpush1.msra.mxu0 %v374
        %878 = vmatprep.subr.mxu0 0.0
        %879 = vmatpush1.msra.mxu0 %v375
        %880 = vmatprep.subr.mxu0 0.0
        %881 = vmatpush1.msra.mxu0 %v376
        %882 = vmatprep.subr.mxu0 0.0
        %883 = vmatpush1.msra.mxu0 %v377
        %884 = vmatprep.subr.mxu0 0.0
        %885 = vmatpush1.msra.mxu0 %v378
        %886 = vmatprep.subr.mxu0 0.0
        %887 = vmatpush1.msra.mxu0 0.0
        %888 = vmatprep.subr.mxu0 0.0
        %889 = vmatpush1.msra.mxu0 0.0
        %890 = vmatprep.subr.mxu0 0.0
        %891 = vmatpush1.msra.mxu0 0.0
        %892 = vmatprep.subr.mxu0 0.0
        %893 = vmatpush1.msra.mxu0 0.0
        %894 = vmatprep.subr.mxu0 0.0
        %895 = vmatpush1.msra.mxu0 0.0
        %896 = vmatprep.subr.mxu0 0.0
        %897 = vmatpush1.msra.mxu0 0.0
        %898 = vmatprep.subr.mxu0 0.0
        %899 = vmatpush1.msra.mxu0 0.0
        %900 = vmatprep.subr.mxu0 0.0
        %901 = vmatpush1.msra.mxu0 0.0
        %902 = vmatprep.subr.mxu0 0.0
        %903 = vmatpush1.msra.mxu0 0.0
        %904 = vmatprep.subr.mxu0 0.0
        %905 = vmatpush1.msra.mxu0 0.0
        %906 = vmatprep.subr.mxu0 0.0
        %907 = vmatpush1.msra.mxu0 0.0
        %908 = vmatprep.subr.mxu0 0.0
        %909 = vmatpush1.msra.mxu0 0.0
        %910 = vmatprep.subr.mxu0 0.0
        %911 = vmatpush1.msra.mxu0 0.0
        %912 = vmatprep.subr.mxu0 0.0
        %913 = vmatpush1.msra.mxu0 0.0
        %914 = vmatprep.subr.mxu0 0.0
        %915 = vmatpush1.msra.mxu0 0.0
        %916 = vmatprep.subr.mxu0 0.0
        %917 = vmatpush1.msra.mxu0 0.0
        %918 = vmatprep.mubr.f32.mxu0 0.0
        %v919 = vand.u32 %v280, 4294901760
        %920 = vmatmul.mubr.f32.gmra.mrb[0].mxu0 %v919
        %v921 = vpop.f32.mrb[0].mxu0
        %v922 = vadd.f32 %v851, %v921
        %v923 = vpop.f32.mrb[0].mxu0
        %924 = vdwg.mxu0
        %v925 = vadd.f32 %v379, %v922
        %926 = vst [vmem:[#allocation2] sm:$0x7] %v925
        // Predicated region
        $region37: #{tpu_custom_call.1} parent=31 // pred_check
          %p927 = pneg %p275
        $region38: #{tpu_custom_call.1} parent=31 // pred_check_branch
          %929 = sbr.rel (%p927) target = $region40
        $region39: #{tpu_custom_call.1} parent=31 // pred_region
          %v930 = vld [vmem:[#allocation2] sm:$0x7]
          %v931 = vmul.f32 %v930, %v930
          %vm932 = vcmask 1042432
          %v933 = vsel %vm932, %v931, 0.0
          %v934 = vrot.slane %v933, 4
          %v935 = vadd.f32 %v933, %v934
          %v936 = vrot.slane %v935, 2
          %v937 = vadd.f32 %v935, %v936
          %v938 = vrot.slane %v937, 1
          %v939 = vadd.f32 %v937, %v938
          %940 = vst [vmem:[%s249] sm:$0x1] %v939
        $region40: #{tpu_custom_call.1} parent=31 // pred_fallthru
          _
        %s941 = sand.u32 %s143, 1
        %s942 = scalar_lea.sflag [#allocation6], %s941
        %s943 = sand.u32 %s143, 1
        %s944 = scalar_lea.vmem [#allocation5], %s943
        // Predicated region
        $region41: #{tpu_custom_call.1} parent=31 // pred_check
          %p945 = pneg %p153
        $region42: #{tpu_custom_call.1} parent=31 // pred_check_branch
          %947 = sbr.rel (%p945) target = $region44
        $region43: #{tpu_custom_call.1} parent=31 // pred_region
          %s949 = ssub.s32 16, 16
          %950 = vsyncadd %s942, %s949
          %s951 = sadd.s32 %s30, %s29
          %s952 = smul.addr %s951, 16
          %s953 = scalar_lea.hbm %s4, %s952
          %s955 = sshll.u32 %s944, 4
          %s956 = int_to_ptr.vmem [resolvable:$true] %s955
          %958 = dma.vmem_to_hbm [thread:$0]  %s956, 16, %s953, %s942
        $region44: #{tpu_custom_call.1} parent=31 // pred_fallthru
          _
      $region32: #{tpu_custom_call.1} parent=5 // pred_fallthru
        _
      %p959 = scmp.le.s32.totalorder 2, %s19
      // Predicated region
      $region45: #{tpu_custom_call.1} parent=5 // pred_check
        %p960 = pneg %p959
      $region46: #{tpu_custom_call.1} parent=5 // pred_check_branch
        %962 = sbr.rel (%p960) target = $region48
      $region47: #{tpu_custom_call.1} parent=5 // pred_region
        %s963 = ssub.s32 %s19, 2
        // Predicated region
        $region49: #{tpu_custom_call.1} parent=47 // pred_check
          %p964 = pneg %p159
        $region50: #{tpu_custom_call.1} parent=47 // pred_check_branch
          %966 = sbr.rel (%p964) target = $region52
        $region51: #{tpu_custom_call.1} parent=47 // pred_region
          %s967 = sand.u32 %s144, 1
          %s968 = scalar_lea.sflag [#allocation6], %s967
          %s969 = sand.u32 %s144, 1
          %s970 = scalar_lea.vmem [#allocation5], %s969
          %971 = dma.done %s968, 16
        $region52: #{tpu_custom_call.1} parent=47 // pred_fallthru
          _
      $region48: #{tpu_custom_call.1} parent=5 // pred_fallthru
        _
    $region6: #{tpu_custom_call.1} parent=1 // loop_footer
      %s23 = sadd.s32 1, %s19
    $region7: #{tpu_custom_call.1} parent=1 // loop_footer_branch
      %18 = sbr.rel target = $region3
    $region8: #{tpu_custom_call.1} parent=1 // loop_exit
      _
    %972 = vsyncpa [#allocation6], 1
    %s973 = scalar_lea.sflag [#allocation6], 1
    %974 = vsyncpa %s973, 1

</llo_original>
